<compile_context>
chip_gen: v6e
topology: v6e:2x2x1
jax: 0.10.0
libtpu: 0.0.40
codegen_flags: <defaults>
</compile_context>

<pallas_src>
import jax
import jax.numpy as jnp
from jax.experimental import pallas as pl
from jax.experimental.pallas import tpu as pltpu


def _round_up(x, m):
    return ((x + m - 1) // m) * m


def _sublane_granularity(dtype):
    # Rows per vreg sublane group: f32 -> 8, bf16/f16 -> 16, int8/fp8 -> 32.
    return {4: 8, 2: 16, 1: 32}.get(jnp.dtype(dtype).itemsize, 8)


def _vmem_capacity_bytes():
    try:
        return int(pltpu.get_tpu_info().vmem_capacity_bytes)
    except Exception:
        return 64 << 20  # conservative fallback (v7x per-TC VMEM)


def _gated_encoding_kernel(x_ref, w_ref, b_ref, o_ref):
    """One (tm, tn) output tile of sigmoid(x @ W + b) * x.

    x_ref: (tm, H)   full-hidden row slab (needed for the matmul)
    w_ref: (H, tn)   column slice of the pre-transposed weight
    b_ref: (1, tn)   bias slice, already f32
    o_ref: (tm, tn)
    """
    j = pl.program_id(1)
    tn = o_ref.shape[1]

    x = x_ref[...]
    # MXU matmul in native operand dtype (bf16 fast path), f32 accumulation.
    g = jnp.dot(x, w_ref[...], preferred_element_type=jnp.float32)
    g = g + b_ref[...]                      # bias already f32
    gate = jax.nn.sigmoid(g)                # f32 sigmoid (EUP exp + VPU)
    # NOTE: only switch to an approx-reciprocal sigmoid if profiling shows the
    # EUP/VPU slot saturated (tiny H); it loosens f32 accuracy.

    # Columns of x that correspond to this output tile.
    if tn == x.shape[1]:
        x_cols = x
    else:
        start = j * tn
        if tn % 128 == 0:
            start = pl.multiple_of(start, 128)
        x_cols = x_ref[:, pl.ds(start, tn)]
    o_ref[...] = (gate * x_cols.astype(jnp.float32)).astype(o_ref.dtype)


def gated_encoding(x, w, b, *, tm=None, tn=None, interpret=False):
    """x: (B, L, H); w: (H_in, H_out) pre-transposed Linear weight; b: (H_out,)."""
    B, L, H = x.shape
    H_in, H_out = w.shape
    assert H_in == H and H_out == H, "gate FeedForward must map H -> H"
    M = B * L

    x_it = jnp.dtype(x.dtype).itemsize
    w_it = jnp.dtype(w.dtype).itemsize
    rg = _sublane_granularity(x.dtype)

    capacity = _vmem_capacity_bytes()
    budget = int(0.80 * capacity)  # headroom for semaphores / internal scratch

    def vmem_needed(tm_, tn_):
        return (2 * tm_ * H * x_it           # x row slab (double-buffered)
                + 2 * tm_ * tn_ * x_it       # output tile (double-buffered)
                + 2 * H * tn_ * w_it         # W column slice (2 pipeline bufs)
                + 2 * tn_ * 4)               # f32 bias slice

    # ---- row tile (dtype-aware rounding) -----------------------------------
    if tm is None:
        if M <= 1024:
            tm = _round_up(M, rg)            # decode/small-M: one row tile
        else:
            tm = 1024                        # large M: amortize W re-stream
    tm = max(rg, _round_up(tm, rg))
    tm = min(tm, _round_up(M, rg))

    # ---- weight/output column tile ------------------------------------------
    if tn is None:
        if H % 128 != 0:
            # Cannot tile into lane-aligned column slices; keep full W but
            # still respect the VMEM budget by shrinking the row tile.
            tn = H
            while vmem_needed(tm, tn) > budget and tm > rg:
                tm = max(rg, _round_up(tm // 2, rg))
        else:
            cands = [H] + [t for t in (2048, 1024, 512, 256, 128)
                           if t < H and H % t == 0]
            tn = next((t for t in cands if vmem_needed(tm, t) <= budget),
                      cands[-1])
            while vmem_needed(tm, tn) > budget and tm > rg:
                tm = max(rg, _round_up(tm // 2, rg))
    assert H % tn == 0, "H must be divisible by the weight column tile"

    grid_m = pl.cdiv(M, tm)

    # ---- keep >= 2 grid blocks so both v7x TensorCores get work -------------
    if grid_m * (H // tn) == 1 and H % 256 == 0:
        tn = H // 2
    grid_n = H // tn
    grid = (grid_m, grid_n)

    x2 = x.reshape(M, H)                         # metadata reshape, no copy pass
    b2 = b.astype(jnp.float32).reshape(1, H)     # cast once, outside the kernel

    vmem_limit = int(min(max(2 * vmem_needed(tm, tn), 16 << 20),
                         int(0.90 * capacity)))

    # W (and bias) are re-streamed once per row tile whenever the column axis
    # is tiled; with a single column tile the constant-index block is fetched
    # exactly once (Pallas elides repeated copies of an unchanged block index).
    w_passes = grid_m if grid_n > 1 else 1
    cost = pl.CostEstimate(
        flops=2 * M * H * H,
        transcendentals=M * H,
        bytes_accessed=int(M * H * x_it                 # x in
                           + M * H * x_it               # out
                           + w_passes * H * H * w_it    # W re-stream
                           + w_passes * H * 4),         # bias
    )

    out = pl.pallas_call(
        _gated_encoding_kernel,
        out_shape=jax.ShapeDtypeStruct((M, H), x.dtype),
        grid_spec=pltpu.PrefetchScalarGridSpec(
            num_scalar_prefetch=0,
            grid=grid,
            in_specs=[
                pl.BlockSpec((tm, H), lambda i, j: (i, 0)),   # x rows (full H)
                pl.BlockSpec((H, tn), lambda i, j: (0, j)),   # weight columns
                pl.BlockSpec((1, tn), lambda i, j: (0, j)),   # bias columns
            ],
            out_specs=pl.BlockSpec((tm, tn), lambda i, j: (i, j)),
        ),
        compiler_params=pltpu.CompilerParams(
            dimension_semantics=("parallel", "parallel"),
            vmem_limit_bytes=vmem_limit,
        ),
        cost_estimate=cost,
        interpret=interpret,
    )(x2, w, b2)

    return out.reshape(B, L, H)


def gated_encoding_ref(x, w, b):
    g = jax.nn.sigmoid(jnp.einsum("blh,hk->blk", x.astype(jnp.float32),
                                  w.astype(jnp.float32)) + b)
    return (g * x.astype(jnp.float32)).astype(x.dtype)


if __name__ == "__main__":
    key = jax.random.PRNGKey(0)
    kx, kw, kb, kx2 = jax.random.split(key, 4)

    # Case 1: f32, decode-shaped (B=2, L=8, H=128).
    B, L, H = 2, 8, 128
    x = jax.random.normal(kx, (B, L, H), dtype=jnp.float32)
    # PyTorch nn.Linear weight is (out, in); stored pre-transposed as (in, out).
    w = jax.random.normal(kw, (H, H), dtype=jnp.float32) * 0.05
    b = jax.random.normal(kb, (H,), dtype=jnp.float32) * 0.05

    y = jax.block_until_ready(gated_encoding(x, w, b))
    y_ref = gated_encoding_ref(x, w, b)
    assert y.shape == (B, L, H)
    assert jnp.allclose(y, y_ref, atol=1e-5, rtol=1e-5), "f32 path mismatch"

    # Case 2: bf16 operand path — MXU fast path, f32 accumulate/sigmoid inside.
    y_bf16 = jax.block_until_ready(
        gated_encoding(x.astype(jnp.bfloat16), w.astype(jnp.bfloat16), b))
    assert y_bf16.shape == (B, L, H)
    assert jnp.allclose(y_bf16.astype(jnp.float32), y_ref,
                        atol=1e-1, rtol=1e-1), "bf16 path mismatch"

    # Case 3: ragged M (3*5=15 rows) + forced small row tile: exercises the
    # pl.cdiv grid with a partially-masked last row tile (no pad/slice pass).
    xr = jax.random.normal(kx2, (3, 5, H), dtype=jnp.float32)
    yr = jax.block_until_ready(gated_encoding(xr, w, b, tm=8))
    assert jnp.allclose(yr, gated_encoding_ref(xr, w, b),
                        atol=1e-5, rtol=1e-5), "ragged-M path mismatch"

    # Case 4: H=256 decode call — 1x1 grid gets split into two column tiles
    # so both TensorCores of a v7x chip receive work.
    H2 = 256
    x4 = jax.random.normal(kx, (2, 4, H2), dtype=jnp.float32)
    w4 = jax.random.normal(kw, (H2, H2), dtype=jnp.float32) * 0.05
    b4 = jax.random.normal(kb, (H2,), dtype=jnp.float32) * 0.05
    y4 = jax.block_until_ready(gated_encoding(x4, w4, b4))
    assert jnp.allclose(y4, gated_encoding_ref(x4, w4, b4),
                        atol=1e-5, rtol=1e-5), "column-split path mismatch"

    print("KERNEL_OK")
</pallas_src>

<mosaic_0001>
module attributes {stable_mosaic.version = 11 : i64} {
  func.func @_gated_encoding_kernel(%arg0: i32, %arg1: i32, %arg2: memref<16x128xf32, #tpu.memory_space<vmem>>, %arg3: memref<128x128xf32, #tpu.memory_space<vmem>>, %arg4: memref<1x128xf32, #tpu.memory_space<vmem>>, %arg5: memref<16x128xf32, #tpu.memory_space<vmem>>) attributes {dimension_semantics = [#tpu.dimension_semantics<parallel>, #tpu.dimension_semantics<parallel>], iteration_bounds = array<i64: 1, 1>, scalar_prefetch = 0 : i64, scratch_operands = 0 : i64, tpu.core_type = #tpu.core_type<tc>, window_params = [{transform_indices = @transform_0, window_bounds = array<i64: 16, 128>}, {transform_indices = @transform_1, window_bounds = array<i64: 128, 128>}, {transform_indices = @transform_2, window_bounds = array<i64: 1, 128>}, {transform_indices = @transform_3, window_bounds = array<i64: 16, 128>}]} {
    %c0 = arith.constant 0 : index
    %c0_0 = arith.constant 0 : index
    %0 = vector.load %arg2[%c0, %c0_0] : memref<16x128xf32, #tpu.memory_space<vmem>>, vector<16x128xf32>
    %c0_1 = arith.constant 0 : index
    %c0_2 = arith.constant 0 : index
    %1 = vector.load %arg3[%c0_1, %c0_2] : memref<128x128xf32, #tpu.memory_space<vmem>>, vector<128x128xf32>
    %cst = arith.constant dense<0.000000e+00> : vector<16x128xf32>
    %2 = tpu.matmul %0, %1, %cst {dimension_numbers = #tpu.dot_dimension_numbers<[1], [0], [0], [1], [0, 0, 1, 1], [], []>} : vector<16x128xf32>, vector<128x128xf32>, vector<16x128xf32> -> vector<16x128xf32>
    %c0_3 = arith.constant 0 : index
    %c0_4 = arith.constant 0 : index
    %3 = vector.load %arg4[%c0_3, %c0_4] : memref<1x128xf32, #tpu.memory_space<vmem>>, vector<1x128xf32>
    %4 = vector.broadcast %3 : vector<1x128xf32> to vector<16x128xf32>
    %5 = arith.addf %2, %4 : vector<16x128xf32>
    %6 = arith.negf %5 : vector<16x128xf32>
    %7 = math.exp %6 : vector<16x128xf32>
    %cst_5 = arith.constant 1.000000e+00 : f32
    %8 = vector.broadcast %cst_5 : f32 to vector<16x128xf32>
    %9 = arith.addf %8, %7 : vector<16x128xf32>
    %10 = arith.divf %8, %9 : vector<16x128xf32>
    %11 = arith.mulf %10, %0 : vector<16x128xf32>
    %c0_6 = arith.constant 0 : index
    %c0_7 = arith.constant 0 : index
    %12 = vector.load %arg5[%c0_6, %c0_7] : memref<16x128xf32, #tpu.memory_space<vmem>>, vector<16x128xf32>
    tpu.vector_store %arg5[%c0_6, %c0_7], %11 {strides = array<i32>} : memref<16x128xf32, #tpu.memory_space<vmem>>, vector<16x128xf32>,
    return
  }
  func.func @transform_0(%arg0: i32, %arg1: i32) -> (i32, i32) {
    %c0_i32 = arith.constant 0 : i32
    %c0_i32_0 = arith.constant 0 : i32
    return %arg0, %c0_i32 : i32, i32
  }
  func.func @transform_1(%arg0: i32, %arg1: i32) -> (i32, i32) {
    %c0_i32 = arith.constant 0 : i32
    %c0_i32_0 = arith.constant 0 : i32
    return %c0_i32, %arg1 : i32, i32
  }
  func.func @transform_2(%arg0: i32, %arg1: i32) -> (i32, i32) {
    %c0_i32 = arith.constant 0 : i32
    %c0_i32_0 = arith.constant 0 : i32
    return %c0_i32, %arg1 : i32, i32
  }
  func.func @transform_3(%arg0: i32, %arg1: i32) -> (i32, i32) {
    %c0_i32 = arith.constant 0 : i32
    return %arg0, %arg1 : i32, i32
  }
}

</mosaic_0001>

<llo_original>
// kernel: tpu_custom_call.1
$region0: #{tpu_custom_call.1}
  #allocation0 [shape = 'u32[]', space=smem, size = 0x4, offset = 0x4, fixed_abs, tag = 'smem constant byte address 0x4 - core index']
  #allocation1 [shape = 'u32[144,128]{1,0:T(1,128)}', space=vmem, size = 0x12000, scoped, tag = 'internal scratch']
  %s0 = inlined_call_operand.hbm [shape: f32[16,128], index: 0, kind: input, shape index: {}]
  %s1 = inlined_call_operand.hbm [shape: f32[128,128], index: 1, kind: input, shape index: {}]
  %s2 = inlined_call_operand.vmem [shape: f32[1,128], index: 2, kind: input, shape index: {}]
  %s3 = inlined_call_operand.hbm [shape: f32[16,128], index: 3, kind: output, shape index: {}]
  %s4 = sld [smem:[#allocation0]]
  $region30: #{tpu_custom_call.1} parent=0
    _
  %s6 = ssub.s32 1, %s4
  %s7 = scalar_select 0, %s6, %s4
  $region1: #{tpu_custom_call.1} parent=0
    #allocation2 [shape = 'u8[8192]{0}', space=vmem, size = 0x2000, scoped, tag = 'input window, operand 0, single buffered']
    #allocation3 [shape = 's32[1]{0}', space=sflag, size = 0x4, scoped, tag = 'scoped memory for tpu_custom_call.1']
    #allocation4 [shape = 's32[1]{0}', space=sflag, size = 0x4, scoped, tag = 'scoped memory for tpu_custom_call.1']
    #allocation5 [shape = 'u8[65536]{0}', space=vmem, size = 0x10000, scoped, tag = 'input window, operand 1, single buffered']
    #allocation6 [shape = 's32[1]{0}', space=sflag, size = 0x4, scoped, tag = 'scoped memory for tpu_custom_call.1']
    #allocation7 [shape = 'u8[8192]{0}', space=vmem, size = 0x2000, scoped, tag = 'output window, operand 0, single buffered']
    %8 = vsyncpa [#allocation3], 0
    %9 = vsyncpa [#allocation6], 0
    %10 = vsyncpa [#allocation4], 0
    // Predicated region
    $region2: #{tpu_custom_call.1} parent=1 // pred_check
      _
    $region3: #{tpu_custom_call.1} parent=1 // pred_check_branch
      %12 = sbr.rel (0) target = $region5
    $region4: #{tpu_custom_call.1} parent=1 // pred_region
      %s14 = ssub.s32 256, 256
      %15 = vsyncadd [#allocation3], %s14
      %s16 = sshll.u32 [#allocation2], 4
      %s17 = int_to_ptr.vmem [resolvable:$true] %s16
      %22 = dma.hbm_to_vmem [thread:$0]  %s0, 256, %s17, [#allocation3], 128, 128, 8
    $region5: #{tpu_custom_call.1} parent=1 // pred_fallthru
      _
    // Predicated region
    $region6: #{tpu_custom_call.1} parent=1 // pred_check
      _
    $region7: #{tpu_custom_call.1} parent=1 // pred_check_branch
      %24 = sbr.rel (0) target = $region9
    $region8: #{tpu_custom_call.1} parent=1 // pred_region
      %s26 = ssub.s32 2048, 2048
      %27 = vsyncadd [#allocation6], %s26
      %s28 = sshll.u32 [#allocation5], 4
      %s29 = int_to_ptr.vmem [resolvable:$true] %s28
      %34 = dma.hbm_to_vmem [thread:$0]  %s1, 2048, %s29, [#allocation6], 128, 128, 8
    $region9: #{tpu_custom_call.1} parent=1 // pred_fallthru
      _
    // Predicated region
    $region10: #{tpu_custom_call.1} parent=1 // pred_check
      _
    $region11: #{tpu_custom_call.1} parent=1 // pred_check_branch
      %36 = sbr.rel (0) target = $region13
    $region12: #{tpu_custom_call.1} parent=1 // pred_region
      _
    $region13: #{tpu_custom_call.1} parent=1 // pred_fallthru
      _
    // Predicated region
    $region14: #{tpu_custom_call.1} parent=1 // pred_check
      _
    $region15: #{tpu_custom_call.1} parent=1 // pred_check_branch
      %38 = sbr.rel (0) target = $region17
    $region16: #{tpu_custom_call.1} parent=1 // pred_region
      %39 = dma.done [#allocation3], 256
    $region17: #{tpu_custom_call.1} parent=1 // pred_fallthru
      _
    // Predicated region
    $region18: #{tpu_custom_call.1} parent=1 // pred_check
      _
    $region19: #{tpu_custom_call.1} parent=1 // pred_check_branch
      %41 = sbr.rel (0) target = $region21
    $region20: #{tpu_custom_call.1} parent=1 // pred_region
      %42 = dma.done [#allocation6], 2048
    $region21: #{tpu_custom_call.1} parent=1 // pred_fallthru
      _
    %v43 = vld [vmem:[#allocation2] sm:$0xff]
    %v44 = vld [vmem:[#allocation2 + $0x8] sm:$0xff]
    %v45 = vld [vmem:[#allocation5] sm:$0xff]
    %v46 = vld [vmem:[#allocation5 + $0x8] sm:$0xff]
    %v47 = vld [vmem:[#allocation5 + $0x10] sm:$0xff]
    %v48 = vld [vmem:[#allocation5 + $0x18] sm:$0xff]
    %v49 = vld [vmem:[#allocation5 + $0x20] sm:$0xff]
    %v50 = vld [vmem:[#allocation5 + $0x28] sm:$0xff]
    %v51 = vld [vmem:[#allocation5 + $0x30] sm:$0xff]
    %v52 = vld [vmem:[#allocation5 + $0x38] sm:$0xff]
    %v53 = vld [vmem:[#allocation5 + $0x40] sm:$0xff]
    %v54 = vld [vmem:[#allocation5 + $0x48] sm:$0xff]
    %v55 = vld [vmem:[#allocation5 + $0x50] sm:$0xff]
    %v56 = vld [vmem:[#allocation5 + $0x58] sm:$0xff]
    %v57 = vld [vmem:[#allocation5 + $0x60] sm:$0xff]
    %v58 = vld [vmem:[#allocation5 + $0x68] sm:$0xff]
    %v59 = vld [vmem:[#allocation5 + $0x70] sm:$0xff]
    %v60 = vld [vmem:[#allocation5 + $0x78] sm:$0xff]
    %v61 = vld [vmem:[%s2] sm:$0x1]
    %v63 = vlaneseq
    %v64 = vshrl.u32 %v63, 7
    %v65 = vsub.s32 0, %v64
    %v66 = vrot.slane %v61, %v65
    %68 = vmatprep.subr.mxu0 0.0
    %69 = vmatpush1.msra.mxu0 %v60
    %70 = vmatprep.subr.mxu0 0.0
    %71 = vmatpush1.msra.mxu0 %v59
    %72 = vmatprep.subr.mxu0 0.0
    %73 = vmatpush1.msra.mxu0 %v58
    %74 = vmatprep.subr.mxu0 0.0
    %75 = vmatpush1.msra.mxu0 %v57
    %76 = vmatprep.subr.mxu0 0.0
    %77 = vmatpush1.msra.mxu0 %v56
    %78 = vmatprep.subr.mxu0 0.0
    %79 = vmatpush1.msra.mxu0 %v55
    %80 = vmatprep.subr.mxu0 0.0
    %81 = vmatpush1.msra.mxu0 %v54
    %82 = vmatprep.subr.mxu0 0.0
    %83 = vmatpush1.msra.mxu0 %v53
    %84 = vmatprep.subr.mxu0 0.0
    %85 = vmatpush1.msra.mxu0 %v52
    %86 = vmatprep.subr.mxu0 0.0
    %87 = vmatpush1.msra.mxu0 %v51
    %88 = vmatprep.subr.mxu0 0.0
    %89 = vmatpush1.msra.mxu0 %v50
    %90 = vmatprep.subr.mxu0 0.0
    %91 = vmatpush1.msra.mxu0 %v49
    %92 = vmatprep.subr.mxu0 0.0
    %93 = vmatpush1.msra.mxu0 %v48
    %94 = vmatprep.subr.mxu0 0.0
    %95 = vmatpush1.msra.mxu0 %v47
    %96 = vmatprep.subr.mxu0 0.0
    %97 = vmatpush1.msra.mxu0 %v46
    %98 = vmatprep.subr.mxu0 0.0
    %99 = vmatpush1.msra.mxu0 %v45
    %100 = vmatprep.subr.mxu0 0.0
    %101 = vmatpush2.msra.mxu0 0.0
    %102 = vmatprep.subr.mxu0 0.0
    %103 = vmatpush2.msra.mxu0 0.0
    %104 = vmatprep.subr.mxu0 0.0
    %105 = vmatpush2.msra.mxu0 0.0
    %106 = vmatprep.subr.mxu0 0.0
    %107 = vmatpush2.msra.mxu0 0.0
    %108 = vmatprep.subr.mxu0 0.0
    %109 = vmatpush2.msra.mxu0 0.0
    %110 = vmatprep.subr.mxu0 0.0
    %111 = vmatpush2.msra.mxu0 0.0
    %112 = vmatprep.subr.mxu0 0.0
    %113 = vmatpush2.msra.mxu0 0.0
    %114 = vmatprep.subr.mxu0 0.0
    %115 = vmatpush2.msra.mxu0 0.0
    %116 = vmatprep.subr.mxu0 0.0
    %117 = vmatpush2.msra.mxu0 0.0
    %118 = vmatprep.subr.mxu0 0.0
    %119 = vmatpush2.msra.mxu0 0.0
    %120 = vmatprep.subr.mxu0 0.0
    %121 = vmatpush2.msra.mxu0 0.0
    %122 = vmatprep.subr.mxu0 0.0
    %123 = vmatpush2.msra.mxu0 0.0
    %124 = vmatprep.subr.mxu0 0.0
    %125 = vmatpush2.msra.mxu0 0.0
    %126 = vmatprep.subr.mxu0 0.0
    %127 = vmatpush2.msra.mxu0 0.0
    %128 = vmatprep.subr.mxu0 0.0
    %129 = vmatpush2.msra.mxu0 0.0
    %130 = vmatprep.subr.mxu0 0.0
    %131 = vmatpush2.msra.mxu0 0.0
    %132 = vmatprep.mubr.f32.mxu0 0.0
    %133 = vmatmul.mubr.f32.gmra.mxu0 %v43
    %v134 = vpop.f32.mrf.mxu0
    %v135 = vadd.f32 %v66, %v134
    %v136 = vpop.f32.mrf.mxu0
    %137 = vmatprep.mubr.f32.mxu0 0.0
    %138 = vmatmul.mubr.f32.gmra.mxu0 %v44
    %v139 = vpop.f32.mrf.mxu0
    %v140 = vadd.f32 %v66, %v139
    %v141 = vpop.f32.mrf.mxu0
    %142 = vdwg.mxu0
    %v143 = vxor.u32 %v135, 2147483648
    %v144 = vxor.u32 %v140, 2147483648
    %v145 = vmul.f32 %v143, 1.442695
    %v146 = vpow.pop %v145
    %v147 = vmul.f32 %v144, 1.442695
    %v148 = vpow.pop %v147
    %v149 = vadd.f32 %v146, 1.0
    %v150 = vadd.f32 %v148, 1.0
    %v151 = vrcp.pop %v149
    %v152 = vmul.f32 1.0, %v151
    %v153 = vrcp.pop %v150
    %v154 = vmul.f32 1.0, %v153
    %v155 = vmul.f32 %v152, %v43
    %v156 = vmul.f32 %v154, %v44
    %157 = vst [vmem:[#allocation7] sm:$0xff] %v155
    %158 = vst [vmem:[#allocation7 + $0x8] sm:$0xff] %v156
    // Predicated region
    $region22: #{tpu_custom_call.1} parent=1 // pred_check
      _
    $region23: #{tpu_custom_call.1} parent=1 // pred_check_branch
      %160 = sbr.rel (0) target = $region25
    $region24: #{tpu_custom_call.1} parent=1 // pred_region
      %s162 = ssub.s32 256, 256
      %163 = vsyncadd [#allocation4], %s162
      %s164 = sshll.u32 [#allocation7], 4
      %s165 = int_to_ptr.vmem [resolvable:$true] %s164
      %170 = dma.vmem_to_hbm [thread:$0]  %s165, 256, %s3, [#allocation4], 128, 128, 8
    $region25: #{tpu_custom_call.1} parent=1 // pred_fallthru
      _
    // Predicated region
    $region26: #{tpu_custom_call.1} parent=1 // pred_check
      _
    $region27: #{tpu_custom_call.1} parent=1 // pred_check_branch
      %172 = sbr.rel (0) target = $region29
    $region28: #{tpu_custom_call.1} parent=1 // pred_region
      %173 = dma.done [#allocation4], 256
    $region29: #{tpu_custom_call.1} parent=1 // pred_fallthru
      _
    %174 = vsyncpa [#allocation3], 1
    %175 = vsyncpa [#allocation6], 1
    %176 = vsyncpa [#allocation4], 1

</llo_original>
